<compile_context>
chip_gen: v6e
topology: v6e:2x2x1
jax: 0.10.0
libtpu: 0.0.40
codegen_flags: <defaults>
</compile_context>

<pallas_src>
import jax
import jax.numpy as jnp
from jax import lax
from jax.experimental import pallas as pl
from jax.experimental.pallas import tpu as pltpu


def node_model_kernel(
    col_ref, hin_ref, x_ref, inv_ref,
    w1_ref, b1_ref, w2_ref, b2_ref,
    w3x_ref, w3a_ref, b3_ref, w4_ref, b4_ref,
    out_ref, agg_ref,
):
    n = pl.program_id(0)                # node-tile index ("parallel")
    e = pl.program_id(1)                # edge-tile index ("arbitrary" reduction)
    TN = agg_ref.shape[0]
    TE = hin_ref.shape[0]

    @pl.when(e == 0)
    def _init():
        agg_ref[...] = jnp.zeros_like(agg_ref)

    # node_mlp_1: Lin(F_x+F_e, H) -> ReLU -> Lin(H, H).  bf16 MXU, f32 acc.
    h = (jnp.dot(hin_ref[...], w1_ref[...], preferred_element_type=jnp.float32)
         + b1_ref[...])                                                # [TE, H]
    h = jnp.maximum(h, 0.0).astype(jnp.bfloat16)
    h = (jnp.dot(h, w2_ref[...], preferred_element_type=jnp.float32)
         + b2_ref[...])                                                # [TE, H]

    # Scatter-add into this node tile's accumulator via an in-kernel one-hot
    # (exact in bf16).  Padded edges carry col == N_pad, which is outside every
    # node tile's id range, so their column is all-zero.
    node_ids = n * TN + lax.broadcasted_iota(jnp.int32, (TN, TE), 0)
    c_t = (node_ids == col_ref[...]).astype(jnp.bfloat16)             # [TN, TE]
    agg_ref[...] += jnp.dot(c_t, h.astype(jnp.bfloat16),
                            preferred_element_type=jnp.float32)       # [TN, H]

    @pl.when(e == pl.num_programs(1) - 1)
    def _finalize():
        mean = agg_ref[...] * inv_ref[...]                             # exact 1/deg
        # node_mlp_2: Lin(F_x+H, H) -> ReLU -> Lin(H, out_dim); concat split
        # into two dots (runs once per node tile, negligible cost).
        h2 = (jnp.dot(x_ref[...], w3x_ref[...], preferred_element_type=jnp.float32)
              + jnp.dot(mean.astype(jnp.bfloat16), w3a_ref[...],
                        preferred_element_type=jnp.float32)
              + b3_ref[...])                                           # [TN, H]
        h2 = jnp.maximum(h2, 0.0).astype(jnp.bfloat16)
        out_ref[...] = (jnp.dot(h2, w4_ref[...], preferred_element_type=jnp.float32)
                        + b4_ref[...]).astype(out_ref.dtype)           # [TN, out]


def _round_up(a, b):
    return (a + b - 1) // b * b


def node_model_forward(x, edge_index, edge_attr, params,
                       *, edge_tile=None, node_tile=1024):
    """x: [N, F_x] f32, edge_index: [2, E] int32, edge_attr: [E, F_e] f32."""
    N, F_x = x.shape
    E, F_e = edge_attr.shape
    H = params["w2"].shape[0]
    out_dim = params["w4"].shape[1]
    F_in = F_x + F_e

    # Generation-aware VMEM budget (v5e/v6e: 128 MiB, v7x: 64 MiB per core).
    try:
        vmem_cap = int(pltpu.get_tpu_info().vmem_capacity_bytes)
    except Exception:                       # unknown target / interpret mode
        vmem_cap = 64 * 1024 * 1024
    vmem_limit = max(32 * 1024 * 1024, vmem_cap - 16 * 1024 * 1024)
    if edge_tile is None:
        edge_tile = 2048 if vmem_cap >= 96 * 1024 * 1024 else 512

    # Node tiling ("parallel" axis: TensorCore sharding + bounded [N,*] buffers).
    node_tile = _round_up(node_tile, 8)
    N_pad = _round_up(max(N, 8), 8)
    if N_pad <= node_tile:
        TN = N_pad
    else:
        TN = node_tile
        N_pad = _round_up(N_pad, TN)
    n_node_tiles = N_pad // TN

    # Edge tiling ("arbitrary" reduction axis).
    if E <= edge_tile:
        TE = _round_up(max(E, 16), 16)      # single full-extent edge block
    else:
        TE = _round_up(edge_tile, 128)      # lane-aligned tile
    E_pad = _round_up(max(E, TE), TE)
    n_edge_steps = E_pad // TE

    row = edge_index[0].astype(jnp.int32)
    col = edge_index[1].astype(jnp.int32)

    # Wrapper-side gather x[row] + concat (memory-bound, XLA-roofline) -> fused
    # node_mlp_1 input; bf16 casts hoisted here.
    h_in = jnp.concatenate([x[row], edge_attr], axis=1).astype(jnp.bfloat16)
    h_in = jnp.zeros((E_pad, F_in), jnp.bfloat16).at[:E].set(h_in)

    # Sentinel invariant: padded edges point at node id N_pad (>= every real
    # node id and outside every node tile's iota range) -> zero scatter column.
    col_p = jnp.full((1, E_pad), N_pad, jnp.int32).at[0, :E].set(col)

    x_p = jnp.zeros((N_pad, F_x), jnp.bfloat16).at[:N].set(x.astype(jnp.bfloat16))

    # Exact inverse in-degree, precomputed (no approx reciprocal in-kernel).
    cnt = jnp.zeros((N_pad,), jnp.float32).at[col].add(1.0)
    inv_cnt = (1.0 / jnp.maximum(cnt, 1.0)).reshape(N_pad, 1)

    w1 = params["w1"].astype(jnp.bfloat16)              # [F_x+F_e, H] fused
    w2 = params["w2"].astype(jnp.bfloat16)
    w3x = params["w3"][:F_x].astype(jnp.bfloat16)       # concat split for mlp2
    w3a = params["w3"][F_x:].astype(jnp.bfloat16)
    w4 = params["w4"].astype(jnp.bfloat16)
    b1 = params["b1"].astype(jnp.float32)
    b2 = params["b2"].astype(jnp.float32)
    b3 = params["b3"].astype(jnp.float32)
    b4 = params["b4"].astype(jnp.float32)

    inputs = (col_p, h_in, x_p, inv_cnt,
              w1, b1, w2, b2, w3x, w3a, b3, w4, b4)

    def const(shape):
        # Grid-invariant block (weights / biases): constant index map, never re-DMA'd.
        nd = len(shape)
        return pl.BlockSpec(shape, lambda n, e, _nd=nd: (0,) * _nd)

    in_specs = [
        pl.BlockSpec((1, TE), lambda n, e: (0, e)),       # col indices  (edge tile)
        pl.BlockSpec((TE, F_in), lambda n, e: (e, 0)),    # mlp1 inputs  (edge tile)
        pl.BlockSpec((TN, F_x), lambda n, e: (n, 0)),     # x            (node tile)
        pl.BlockSpec((TN, 1), lambda n, e: (n, 0)),       # 1/deg        (node tile)
        const(w1.shape), const(b1.shape), const(w2.shape), const(b2.shape),
        const(w3x.shape), const(w3a.shape), const(b3.shape),
        const(w4.shape), const(b4.shape),
    ]

    flops = 2 * (
        n_node_tiles * E_pad * (F_in * H + H * H)     # edge MLP (per node tile)
        + N_pad * E_pad * H                           # one-hot scatter
        + N_pad * (F_x * H + H * H + H * out_dim)     # node MLP
    )
    bytes_accessed = (
        n_node_tiles * (E_pad * F_in * 2 + E_pad * 4)         # h_in + col per node tile
        + N_pad * (F_x * 2 + 4 + out_dim * 4)                 # x, inv, out
        + sum(int(a.size) * a.dtype.itemsize
              for a in (w1, b1, w2, b2, w3x, w3a, b3, w4, b4))
    )
    cost = pl.CostEstimate(flops=int(flops), transcendentals=0,
                           bytes_accessed=int(bytes_accessed))

    out = pl.pallas_call(
        node_model_kernel,
        out_shape=jax.ShapeDtypeStruct((N_pad, out_dim), jnp.float32),
        grid_spec=pltpu.PrefetchScalarGridSpec(
            num_scalar_prefetch=0,
            grid=(n_node_tiles, n_edge_steps),
            in_specs=in_specs,
            out_specs=pl.BlockSpec((TN, out_dim), lambda n, e: (n, 0)),
            scratch_shapes=[pltpu.VMEM((TN, H), jnp.float32)],   # agg accumulator
        ),
        compiler_params=pltpu.CompilerParams(
            dimension_semantics=("parallel", "arbitrary"),
            vmem_limit_bytes=int(vmem_limit),
        ),
        cost_estimate=cost,
    )(*inputs)

    return out[:N]


def make_params(F_x=32, F_e=32, out_dim=64, hidden=64, seed=0):
    """Deterministic synthetic parameters. Linear y = x @ W + b (W is [in, out])."""
    key = jax.random.PRNGKey(seed)
    ks = jax.random.split(key, 8)

    def w(k, shape):
        fan_in = shape[0]
        return (jax.random.uniform(k, shape, jnp.float32, -1.0, 1.0)
                / jnp.sqrt(jnp.float32(fan_in)))

    return {
        "w1": w(ks[0], (F_x + F_e, hidden)), "b1": w(ks[1], (1, hidden)),
        "w2": w(ks[2], (hidden, hidden)),    "b2": w(ks[3], (1, hidden)),
        "w3": w(ks[4], (F_x + hidden, hidden)), "b3": w(ks[5], (1, hidden)),
        "w4": w(ks[6], (hidden, out_dim)),   "b4": w(ks[7], (1, out_dim)),
    }


def node_model_reference(x, edge_index, edge_attr, params):
    """Pure-JAX f32 reference mirroring the PyTorch forward."""
    row, col = edge_index[0], edge_index[1]
    N = x.shape[0]
    h = jnp.concatenate([x[row], edge_attr], axis=1) @ params["w1"] + params["b1"]
    h = jnp.maximum(h, 0.0) @ params["w2"] + params["b2"]
    agg = jnp.zeros((N, h.shape[1]), jnp.float32).at[col].add(h)
    cnt = jnp.zeros((N,), jnp.float32).at[col].add(1.0)
    mean = agg / jnp.maximum(cnt, 1.0)[:, None]
    h2 = jnp.concatenate([x, mean], axis=1) @ params["w3"] + params["b3"]
    h2 = jnp.maximum(h2, 0.0)
    return h2 @ params["w4"] + params["b4"]


if __name__ == "__main__":
    F_x, F_e, out_dim = 32, 32, 64
    N, E = 8, 16

    key = jax.random.PRNGKey(0)
    kx, ke, kr, kc = jax.random.split(key, 4)
    x = jax.random.normal(kx, (N, F_x), jnp.float32)
    edge_attr = jax.random.normal(ke, (E, F_e), jnp.float32)
    edge_index = jnp.stack([
        jax.random.randint(kr, (E,), 0, N, dtype=jnp.int32),
        jax.random.randint(kc, (E,), 0, N, dtype=jnp.int32),
    ])
    # u, batch are unused by NodeModel.forward.

    params = make_params(F_x, F_e, out_dim)

    out = jax.block_until_ready(node_model_forward(x, edge_index, edge_attr, params))
    ref = node_model_reference(x, edge_index, edge_attr, params)

    assert out.shape == (N, out_dim)
    # bf16 activations/weights on the MXU (f32 accumulation) => modest tolerance.
    assert jnp.allclose(out, ref, atol=5e-2, rtol=5e-2), \
        float(jnp.max(jnp.abs(out - ref)))

    print("KERNEL_OK")
</pallas_src>

<mosaic_0001>
module attributes {stable_mosaic.version = 11 : i64} {
  func.func @node_model_kernel(%arg0: i32, %arg1: i32, %arg2: memref<1x16xi32, #tpu.memory_space<vmem>>, %arg3: memref<16x64xbf16, #tpu.memory_space<vmem>>, %arg4: memref<8x32xbf16, #tpu.memory_space<vmem>>, %arg5: memref<8x1xf32, #tpu.memory_space<vmem>>, %arg6: memref<64x64xbf16, #tpu.memory_space<vmem>>, %arg7: memref<1x64xf32, #tpu.memory_space<vmem>>, %arg8: memref<64x64xbf16, #tpu.memory_space<vmem>>, %arg9: memref<1x64xf32, #tpu.memory_space<vmem>>, %arg10: memref<32x64xbf16, #tpu.memory_space<vmem>>, %arg11: memref<64x64xbf16, #tpu.memory_space<vmem>>, %arg12: memref<1x64xf32, #tpu.memory_space<vmem>>, %arg13: memref<64x64xbf16, #tpu.memory_space<vmem>>, %arg14: memref<1x64xf32, #tpu.memory_space<vmem>>, %arg15: memref<8x64xf32, #tpu.memory_space<vmem>>, %arg16: memref<8x64xf32, #tpu.memory_space<vmem>>) attributes {dimension_semantics = [#tpu.dimension_semantics<parallel>, #tpu.dimension_semantics<arbitrary>], iteration_bounds = array<i64: 1, 1>, scalar_prefetch = 0 : i64, scratch_operands = 1 : i64, tpu.core_type = #tpu.core_type<tc>, window_params = [{transform_indices = @transform_0, window_bounds = array<i64: 1, 16>}, {transform_indices = @transform_1, window_bounds = array<i64: 16, 64>}, {transform_indices = @transform_2, window_bounds = array<i64: 8, 32>}, {transform_indices = @transform_3, window_bounds = array<i64: 8, 1>}, {pipeline_mode = #tpu.pipeline_mode<synchronous>, transform_indices = @transform_4, window_bounds = array<i64: 64, 64>}, {pipeline_mode = #tpu.pipeline_mode<synchronous>, transform_indices = @transform_5, window_bounds = array<i64: 1, 64>}, {pipeline_mode = #tpu.pipeline_mode<synchronous>, transform_indices = @transform_6, window_bounds = array<i64: 64, 64>}, {pipeline_mode = #tpu.pipeline_mode<synchronous>, transform_indices = @transform_7, window_bounds = array<i64: 1, 64>}, {pipeline_mode = #tpu.pipeline_mode<synchronous>, transform_indices = @transform_8, window_bounds = array<i64: 32, 64>}, {pipeline_mode = #tpu.pipeline_mode<synchronous>, transform_indices = @transform_9, window_bounds = array<i64: 64, 64>}, {pipeline_mode = #tpu.pipeline_mode<synchronous>, transform_indices = @transform_10, window_bounds = array<i64: 1, 64>}, {pipeline_mode = #tpu.pipeline_mode<synchronous>, transform_indices = @transform_11, window_bounds = array<i64: 64, 64>}, {pipeline_mode = #tpu.pipeline_mode<synchronous>, transform_indices = @transform_12, window_bounds = array<i64: 1, 64>}, {transform_indices = @transform_13, window_bounds = array<i64: 8, 64>}]} {
    %c0_i32 = arith.constant 0 : i32
    %0 = arith.cmpi eq, %arg1, %c0_i32 : i32
    %1 = arith.extui %0 : i1 to i32
    %c0_i32_0 = arith.constant 0 : i32
    %2 = arith.cmpi ne, %1, %c0_i32_0 : i32
    scf.if %2 {
      %cst_21 = arith.constant 0.000000e+00 : f32
      %35 = vector.broadcast %cst_21 : f32 to vector<8x64xf32>
      %c0_22 = arith.constant 0 : index
      %c0_23 = arith.constant 0 : index
      %36 = vector.load %arg16[%c0_22, %c0_23] : memref<8x64xf32, #tpu.memory_space<vmem>>, vector<8x64xf32>
      tpu.vector_store %arg16[%c0_22, %c0_23], %35 {strides = array<i32>} : memref<8x64xf32, #tpu.memory_space<vmem>>, vector<8x64xf32>,
    } else {
    }
    %c0 = arith.constant 0 : index
    %c0_1 = arith.constant 0 : index
    %3 = vector.load %arg3[%c0, %c0_1] : memref<16x64xbf16, #tpu.memory_space<vmem>>, vector<16x64xbf16>
    %c0_2 = arith.constant 0 : index
    %c0_3 = arith.constant 0 : index
    %4 = vector.load %arg6[%c0_2, %c0_3] : memref<64x64xbf16, #tpu.memory_space<vmem>>, vector<64x64xbf16>
    %cst = arith.constant dense<0.000000e+00> : vector<16x64xf32>
    %5 = tpu.matmul %3, %4, %cst {dimension_numbers = #tpu.dot_dimension_numbers<[1], [0], [0], [1], [0, 0, 1, 1], [], []>} : vector<16x64xbf16>, vector<64x64xbf16>, vector<16x64xf32> -> vector<16x64xf32>
    %c0_4 = arith.constant 0 : index
    %c0_5 = arith.constant 0 : index
    %6 = vector.load %arg7[%c0_4, %c0_5] : memref<1x64xf32, #tpu.memory_space<vmem>>, vector<1x64xf32>
    %7 = vector.broadcast %6 : vector<1x64xf32> to vector<16x64xf32>
    %8 = arith.addf %5, %7 : vector<16x64xf32>
    %cst_6 = arith.constant 0.000000e+00 : f32
    %9 = vector.broadcast %cst_6 : f32 to vector<16x64xf32>
    %10 = arith.maximumf %8, %9 : vector<16x64xf32>
    %11 = arith.truncf %10 : vector<16x64xf32> to vector<16x64xbf16>
    %c0_7 = arith.constant 0 : index
    %c0_8 = arith.constant 0 : index
    %12 = vector.load %arg8[%c0_7, %c0_8] : memref<64x64xbf16, #tpu.memory_space<vmem>>, vector<64x64xbf16>
    %cst_9 = arith.constant dense<0.000000e+00> : vector<16x64xf32>
    %13 = tpu.matmul %11, %12, %cst_9 {dimension_numbers = #tpu.dot_dimension_numbers<[1], [0], [0], [1], [0, 0, 1, 1], [], []>} : vector<16x64xbf16>, vector<64x64xbf16>, vector<16x64xf32> -> vector<16x64xf32>
    %c0_10 = arith.constant 0 : index
    %c0_11 = arith.constant 0 : index
    %14 = vector.load %arg9[%c0_10, %c0_11] : memref<1x64xf32, #tpu.memory_space<vmem>>, vector<1x64xf32>
    %15 = vector.broadcast %14 : vector<1x64xf32> to vector<16x64xf32>
    %16 = arith.addf %13, %15 : vector<16x64xf32>
    %c8_i32 = arith.constant 8 : i32
    %17 = arith.muli %arg0, %c8_i32 : i32
    %18 = tpu.iota {dimensions = array<i32: 0>} : vector<8x16xi32>
    %19 = vector.broadcast %17 : i32 to vector<8x16xi32>
    %20 = arith.addi %19, %18 : vector<8x16xi32>
    %c0_12 = arith.constant 0 : index
    %c0_13 = arith.constant 0 : index
    %21 = vector.load %arg2[%c0_12, %c0_13] : memref<1x16xi32, #tpu.memory_space<vmem>>, vector<1x16xi32>
    %22 = vector.broadcast %21 : vector<1x16xi32> to vector<8x16xi32>
    %23 = arith.cmpi eq, %20, %22 : vector<8x16xi32>
    %24 = arith.extui %23 : vector<8x16xi1> to vector<8x16xi32>
    %25 = arith.sitofp %24 : vector<8x16xi32> to vector<8x16xf32>
    %26 = arith.truncf %25 : vector<8x16xf32> to vector<8x16xbf16>
    %c0_14 = arith.constant 0 : index
    %c0_15 = arith.constant 0 : index
    %27 = vector.load %arg16[%c0_14, %c0_15] : memref<8x64xf32, #tpu.memory_space<vmem>>, vector<8x64xf32>
    %28 = arith.truncf %16 : vector<16x64xf32> to vector<16x64xbf16>
    %cst_16 = arith.constant dense<0.000000e+00> : vector<8x64xf32>
    %29 = tpu.matmul %26, %28, %cst_16 {dimension_numbers = #tpu.dot_dimension_numbers<[1], [0], [0], [1], [0, 0, 1, 1], [], []>} : vector<8x16xbf16>, vector<16x64xbf16>, vector<8x64xf32> -> vector<8x64xf32>
    %30 = arith.addf %27, %29 : vector<8x64xf32>
    %c0_17 = arith.constant 0 : index
    %c0_18 = arith.constant 0 : index
    %31 = vector.load %arg16[%c0_17, %c0_18] : memref<8x64xf32, #tpu.memory_space<vmem>>, vector<8x64xf32>
    tpu.vector_store %arg16[%c0_17, %c0_18], %30 {strides = array<i32>} : memref<8x64xf32, #tpu.memory_space<vmem>>, vector<8x64xf32>,
    %c0_i32_19 = arith.constant 0 : i32
    %32 = arith.cmpi eq, %arg1, %c0_i32_19 : i32
    %33 = arith.extui %32 : i1 to i32
    %c0_i32_20 = arith.constant 0 : i32
    %34 = arith.cmpi ne, %33, %c0_i32_20 : i32
    scf.if %34 {
      %c0_21 = arith.constant 0 : index
      %c0_22 = arith.constant 0 : index
      %35 = vector.load %arg16[%c0_21, %c0_22] : memref<8x64xf32, #tpu.memory_space<vmem>>, vector<8x64xf32>
      %c0_23 = arith.constant 0 : index
      %c0_24 = arith.constant 0 : index
      %36 = vector.load %arg5[%c0_23, %c0_24] : memref<8x1xf32, #tpu.memory_space<vmem>>, vector<8x1xf32>
      %37 = vector.broadcast %36 : vector<8x1xf32> to vector<8x64xf32>
      %38 = arith.mulf %35, %37 : vector<8x64xf32>
      %c0_25 = arith.constant 0 : index
      %c0_26 = arith.constant 0 : index
      %39 = vector.load %arg4[%c0_25, %c0_26] : memref<8x32xbf16, #tpu.memory_space<vmem>>, vector<8x32xbf16>
      %c0_27 = arith.constant 0 : index
      %c0_28 = arith.constant 0 : index
      %40 = vector.load %arg10[%c0_27, %c0_28] : memref<32x64xbf16, #tpu.memory_space<vmem>>, vector<32x64xbf16>
      %cst_29 = arith.constant dense<0.000000e+00> : vector<8x64xf32>
      %41 = tpu.matmul %39, %40, %cst_29 {dimension_numbers = #tpu.dot_dimension_numbers<[1], [0], [0], [1], [0, 0, 1, 1], [], []>} : vector<8x32xbf16>, vector<32x64xbf16>, vector<8x64xf32> -> vector<8x64xf32>
      %42 = arith.truncf %38 : vector<8x64xf32> to vector<8x64xbf16>
      %c0_30 = arith.constant 0 : index
      %c0_31 = arith.constant 0 : index
      %43 = vector.load %arg11[%c0_30, %c0_31] : memref<64x64xbf16, #tpu.memory_space<vmem>>, vector<64x64xbf16>
      %cst_32 = arith.constant dense<0.000000e+00> : vector<8x64xf32>
      %44 = tpu.matmul %42, %43, %cst_32 {dimension_numbers = #tpu.dot_dimension_numbers<[1], [0], [0], [1], [0, 0, 1, 1], [], []>} : vector<8x64xbf16>, vector<64x64xbf16>, vector<8x64xf32> -> vector<8x64xf32>
      %45 = arith.addf %41, %44 : vector<8x64xf32>
      %c0_33 = arith.constant 0 : index
      %c0_34 = arith.constant 0 : index
      %46 = vector.load %arg12[%c0_33, %c0_34] : memref<1x64xf32, #tpu.memory_space<vmem>>, vector<1x64xf32>
      %47 = vector.broadcast %46 : vector<1x64xf32> to vector<8x64xf32>
      %48 = arith.addf %45, %47 : vector<8x64xf32>
      %cst_35 = arith.constant 0.000000e+00 : f32
      %49 = vector.broadcast %cst_35 : f32 to vector<8x64xf32>
      %50 = arith.maximumf %48, %49 : vector<8x64xf32>
      %51 = arith.truncf %50 : vector<8x64xf32> to vector<8x64xbf16>
      %c0_36 = arith.constant 0 : index
      %c0_37 = arith.constant 0 : index
      %52 = vector.load %arg13[%c0_36, %c0_37] : memref<64x64xbf16, #tpu.memory_space<vmem>>, vector<64x64xbf16>
      %cst_38 = arith.constant dense<0.000000e+00> : vector<8x64xf32>
      %53 = tpu.matmul %51, %52, %cst_38 {dimension_numbers = #tpu.dot_dimension_numbers<[1], [0], [0], [1], [0, 0, 1, 1], [], []>} : vector<8x64xbf16>, vector<64x64xbf16>, vector<8x64xf32> -> vector<8x64xf32>
      %c0_39 = arith.constant 0 : index
      %c0_40 = arith.constant 0 : index
      %54 = vector.load %arg14[%c0_39, %c0_40] : memref<1x64xf32, #tpu.memory_space<vmem>>, vector<1x64xf32>
      %55 = vector.broadcast %54 : vector<1x64xf32> to vector<8x64xf32>
      %56 = arith.addf %53, %55 : vector<8x64xf32>
      %c0_41 = arith.constant 0 : index
      %c0_42 = arith.constant 0 : index
      %57 = vector.load %arg15[%c0_41, %c0_42] : memref<8x64xf32, #tpu.memory_space<vmem>>, vector<8x64xf32>
      tpu.vector_store %arg15[%c0_41, %c0_42], %56 {strides = array<i32>} : memref<8x64xf32, #tpu.memory_space<vmem>>, vector<8x64xf32>,
    } else {
    }
    return
  }
  func.func @transform_0(%arg0: i32, %arg1: i32) -> (i32, i32) {
    %c0_i32 = arith.constant 0 : i32
    %c0_i32_0 = arith.constant 0 : i32
    return %c0_i32, %arg1 : i32, i32
  }
  func.func @transform_1(%arg0: i32, %arg1: i32) -> (i32, i32) {
    %c0_i32 = arith.constant 0 : i32
    %c0_i32_0 = arith.constant 0 : i32
    return %arg1, %c0_i32 : i32, i32
  }
  func.func @transform_2(%arg0: i32, %arg1: i32) -> (i32, i32) {
    %c0_i32 = arith.constant 0 : i32
    %c0_i32_0 = arith.constant 0 : i32
    return %arg0, %c0_i32 : i32, i32
  }
  func.func @transform_3(%arg0: i32, %arg1: i32) -> (i32, i32) {
    %c0_i32 = arith.constant 0 : i32
    %c0_i32_0 = arith.constant 0 : i32
    return %arg0, %c0_i32 : i32, i32
  }
  func.func @transform_4(%arg0: i32, %arg1: i32) -> (i32, i32) {
    %c0_i32 = arith.constant 0 : i32
    %c0_i32_0 = arith.constant 0 : i32
    %c0_i32_1 = arith.constant 0 : i32
    return %c0_i32, %c0_i32_0 : i32, i32
  }
  func.func @transform_5(%arg0: i32, %arg1: i32) -> (i32, i32) {
    %c0_i32 = arith.constant 0 : i32
    %c0_i32_0 = arith.constant 0 : i32
    %c0_i32_1 = arith.constant 0 : i32
    return %c0_i32, %c0_i32_0 : i32, i32
  }
  func.func @transform_6(%arg0: i32, %arg1: i32) -> (i32, i32) {
    %c0_i32 = arith.constant 0 : i32
    %c0_i32_0 = arith.constant 0 : i32
    %c0_i32_1 = arith.constant 0 : i32
    return %c0_i32, %c0_i32_0 : i32, i32
  }
  func.func @transform_7(%arg0: i32, %arg1: i32) -> (i32, i32) {
    %c0_i32 = arith.constant 0 : i32
    %c0_i32_0 = arith.constant 0 : i32
    %c0_i32_1 = arith.constant 0 : i32
    return %c0_i32, %c0_i32_0 : i32, i32
  }
  func.func @transform_8(%arg0: i32, %arg1: i32) -> (i32, i32) {
    %c0_i32 = arith.constant 0 : i32
    %c0_i32_0 = arith.constant 0 : i32
    %c0_i32_1 = arith.constant 0 : i32
    return %c0_i32, %c0_i32_0 : i32, i32
  }
  func.func @transform_9(%arg0: i32, %arg1: i32) -> (i32, i32) {
    %c0_i32 = arith.constant 0 : i32
    %c0_i32_0 = arith.constant 0 : i32
    %c0_i32_1 = arith.constant 0 : i32
    return %c0_i32, %c0_i32_0 : i32, i32
  }
  func.func @transform_10(%arg0: i32, %arg1: i32) -> (i32, i32) {
    %c0_i32 = arith.constant 0 : i32
    %c0_i32_0 = arith.constant 0 : i32
    %c0_i32_1 = arith.constant 0 : i32
    return %c0_i32, %c0_i32_0 : i32, i32
  }
  func.func @transform_11(%arg0: i32, %arg1: i32) -> (i32, i32) {
    %c0_i32 = arith.constant 0 : i32
    %c0_i32_0 = arith.constant 0 : i32
    %c0_i32_1 = arith.constant 0 : i32
    return %c0_i32, %c0_i32_0 : i32, i32
  }
  func.func @transform_12(%arg0: i32, %arg1: i32) -> (i32, i32) {
    %c0_i32 = arith.constant 0 : i32
    %c0_i32_0 = arith.constant 0 : i32
    %c0_i32_1 = arith.constant 0 : i32
    return %c0_i32, %c0_i32_0 : i32, i32
  }
  func.func @transform_13(%arg0: i32, %arg1: i32) -> (i32, i32) {
    %c0_i32 = arith.constant 0 : i32
    %c0_i32_0 = arith.constant 0 : i32
    return %arg0, %c0_i32 : i32, i32
  }
}

</mosaic_0001>

<llo_original>
// kernel: tpu_custom_call.1
$region0: #{tpu_custom_call.1}
  #allocation0 [shape = 'u32[]', space=smem, size = 0x4, offset = 0x4, fixed_abs, tag = 'smem constant byte address 0x4 - core index']
  #allocation1 [shape = 'u32[144,128]{1,0:T(1,128)}', space=vmem, size = 0x12000, scoped, tag = 'internal scratch']
  #allocation2 [shape = 'f32[8,64]{1,0:T(8,128)}', space=vmem, size = 0x1000, scoped, tag = 'scratch operand']
  %s0 = inlined_call_operand.vmem [shape: s32[1,16], index: 0, kind: input, shape index: {}]
  %s1 = inlined_call_operand.hbm [shape: bf16[16,64], index: 1, kind: input, shape index: {}]
  %s2 = inlined_call_operand.vmem [shape: bf16[8,32], index: 2, kind: input, shape index: {}]
  %s3 = inlined_call_operand.vmem [shape: f32[8,1], index: 3, kind: input, shape index: {}]
  %s4 = inlined_call_operand.hbm [shape: bf16[64,64], index: 4, kind: input, shape index: {}]
  %s5 = inlined_call_operand.vmem [shape: f32[1,64], index: 5, kind: input, shape index: {}]
  %s6 = inlined_call_operand.hbm [shape: bf16[64,64], index: 6, kind: input, shape index: {}]
  %s7 = inlined_call_operand.vmem [shape: f32[1,64], index: 7, kind: input, shape index: {}]
  %s8 = inlined_call_operand.vmem [shape: bf16[32,64], index: 8, kind: input, shape index: {}]
  %s9 = inlined_call_operand.hbm [shape: bf16[64,64], index: 9, kind: input, shape index: {}]
  %s10 = inlined_call_operand.vmem [shape: f32[1,64], index: 10, kind: input, shape index: {}]
  %s11 = inlined_call_operand.hbm [shape: bf16[64,64], index: 11, kind: input, shape index: {}]
  %s12 = inlined_call_operand.vmem [shape: f32[1,64], index: 12, kind: input, shape index: {}]
  %s13 = inlined_call_operand.hbm [shape: f32[8,64], index: 13, kind: output, shape index: {}]
  %s14 = sld [smem:[#allocation0]]
  $region90: #{tpu_custom_call.1} parent=0
    _
  %s16 = ssub.s32 1, %s14
  %s17 = scalar_select 0, %s16, %s14
  $region1: #{tpu_custom_call.1} parent=0
    #allocation3 [shape = 'u8[4096]{0}', space=vmem, size = 0x1000, scoped, tag = 'input window, operand 1, single buffered']
    #allocation4 [shape = 's32[1]{0}', space=sflag, size = 0x4, scoped, tag = 'scoped memory for tpu_custom_call.1']
    #allocation5 [shape = 's32[1]{0}', space=sflag, size = 0x4, scoped, tag = 'scoped memory for tpu_custom_call.1']
    #allocation6 [shape = 'u8[16384]{0}', space=vmem, size = 0x4000, scoped, tag = 'input window, operand 4, single buffered']
    #allocation7 [shape = 's32[1]{0}', space=sflag, size = 0x4, scoped, tag = 'scoped memory for tpu_custom_call.1']
    #allocation8 [shape = 'u8[16384]{0}', space=vmem, size = 0x4000, scoped, tag = 'input window, operand 6, single buffered']
    #allocation9 [shape = 'u8[16384]{0}', space=vmem, size = 0x4000, scoped, tag = 'input window, operand 9, single buffered']
    #allocation10 [shape = 's32[1]{0}', space=sflag, size = 0x4, scoped, tag = 'scoped memory for tpu_custom_call.1']
    #allocation11 [shape = 'u8[16384]{0}', space=vmem, size = 0x4000, scoped, tag = 'input window, operand 11, single buffered']
    #allocation12 [shape = 'u8[4096]{0}', space=vmem, size = 0x1000, scoped, tag = 'output window, operand 0, single buffered']
    %18 = vsyncpa [#allocation4], 0
    %19 = vsyncpa [#allocation7], 0
    %20 = vsyncpa [#allocation10], 0
    %21 = vsyncpa [#allocation5], 0
    // Predicated region
    $region2: #{tpu_custom_call.1} parent=1 // pred_check
      _
    $region3: #{tpu_custom_call.1} parent=1 // pred_check_branch
      %23 = sbr.rel (0) target = $region5
    $region4: #{tpu_custom_call.1} parent=1 // pred_region
      _
    $region5: #{tpu_custom_call.1} parent=1 // pred_fallthru
      _
    // Predicated region
    $region6: #{tpu_custom_call.1} parent=1 // pred_check
      _
    $region7: #{tpu_custom_call.1} parent=1 // pred_check_branch
      %25 = sbr.rel (0) target = $region9
    $region8: #{tpu_custom_call.1} parent=1 // pred_region
      %s27 = ssub.s32 128, 128
      %28 = vsyncadd [#allocation4], %s27
      %s29 = sshll.u32 [#allocation3], 4
      %s30 = int_to_ptr.vmem [resolvable:$true] %s29
      %35 = dma.hbm_to_vmem [thread:$0]  %s1, 128, %s30, [#allocation4], 64, 64, 4
    $region9: #{tpu_custom_call.1} parent=1 // pred_fallthru
      _
    // Predicated region
    $region10: #{tpu_custom_call.1} parent=1 // pred_check
      _
    $region11: #{tpu_custom_call.1} parent=1 // pred_check_branch
      %37 = sbr.rel (0) target = $region13
    $region12: #{tpu_custom_call.1} parent=1 // pred_region
      _
    $region13: #{tpu_custom_call.1} parent=1 // pred_fallthru
      _
    // Predicated region
    $region14: #{tpu_custom_call.1} parent=1 // pred_check
      _
    $region15: #{tpu_custom_call.1} parent=1 // pred_check_branch
      %39 = sbr.rel (0) target = $region17
    $region16: #{tpu_custom_call.1} parent=1 // pred_region
      _
    $region17: #{tpu_custom_call.1} parent=1 // pred_fallthru
      _
    // Predicated region
    $region18: #{tpu_custom_call.1} parent=1 // pred_check
      _
    $region19: #{tpu_custom_call.1} parent=1 // pred_check_branch
      %41 = sbr.rel (0) target = $region21
    $region20: #{tpu_custom_call.1} parent=1 // pred_region
      %s43 = ssub.s32 512, 512
      %44 = vsyncadd [#allocation7], %s43
      %s45 = sshll.u32 [#allocation6], 4
      %s46 = int_to_ptr.vmem [resolvable:$true] %s45
      %51 = dma.hbm_to_vmem [thread:$0]  %s4, 512, %s46, [#allocation7], 64, 64, 4
    $region21: #{tpu_custom_call.1} parent=1 // pred_fallthru
      _
    // Predicated region
    $region22: #{tpu_custom_call.1} parent=1 // pred_check
      _
    $region23: #{tpu_custom_call.1} parent=1 // pred_check_branch
      %53 = sbr.rel (0) target = $region25
    $region24: #{tpu_custom_call.1} parent=1 // pred_region
      _
    $region25: #{tpu_custom_call.1} parent=1 // pred_fallthru
      _
    // Predicated region
    $region26: #{tpu_custom_call.1} parent=1 // pred_check
      _
    $region27: #{tpu_custom_call.1} parent=1 // pred_check_branch
      %55 = sbr.rel (0) target = $region29
    $region28: #{tpu_custom_call.1} parent=1 // pred_region
      %s57 = ssub.s32 512, 512
      %58 = vsyncadd [#allocation7], %s57
      %s59 = sshll.u32 [#allocation8], 4
      %s60 = int_to_ptr.vmem [resolvable:$true] %s59
      %65 = dma.hbm_to_vmem [thread:$0]  %s6, 512, %s60, [#allocation7], 64, 64, 4
    $region29: #{tpu_custom_call.1} parent=1 // pred_fallthru
      _
    // Predicated region
    $region30: #{tpu_custom_call.1} parent=1 // pred_check
      _
    $region31: #{tpu_custom_call.1} parent=1 // pred_check_branch
      %67 = sbr.rel (0) target = $region33
    $region32: #{tpu_custom_call.1} parent=1 // pred_region
      _
    $region33: #{tpu_custom_call.1} parent=1 // pred_fallthru
      _
    // Predicated region
    $region34: #{tpu_custom_call.1} parent=1 // pred_check
      _
    $region35: #{tpu_custom_call.1} parent=1 // pred_check_branch
      %69 = sbr.rel (0) target = $region37
    $region36: #{tpu_custom_call.1} parent=1 // pred_region
      _
    $region37: #{tpu_custom_call.1} parent=1 // pred_fallthru
      _
    // Predicated region
    $region38: #{tpu_custom_call.1} parent=1 // pred_check
      _
    $region39: #{tpu_custom_call.1} parent=1 // pred_check_branch
      %71 = sbr.rel (0) target = $region41
    $region40: #{tpu_custom_call.1} parent=1 // pred_region
      %s73 = ssub.s32 512, 512
      %74 = vsyncadd [#allocation10], %s73
      %s75 = sshll.u32 [#allocation9], 4
      %s76 = int_to_ptr.vmem [resolvable:$true] %s75
      %81 = dma.hbm_to_vmem [thread:$0]  %s9, 512, %s76, [#allocation10], 64, 64, 4
    $region41: #{tpu_custom_call.1} parent=1 // pred_fallthru
      _
    // Predicated region
    $region42: #{tpu_custom_call.1} parent=1 // pred_check
      _
    $region43: #{tpu_custom_call.1} parent=1 // pred_check_branch
      %83 = sbr.rel (0) target = $region45
    $region44: #{tpu_custom_call.1} parent=1 // pred_region
      _
    $region45: #{tpu_custom_call.1} parent=1 // pred_fallthru
      _
    // Predicated region
    $region46: #{tpu_custom_call.1} parent=1 // pred_check
      _
    $region47: #{tpu_custom_call.1} parent=1 // pred_check_branch
      %85 = sbr.rel (0) target = $region49
    $region48: #{tpu_custom_call.1} parent=1 // pred_region
      %s87 = ssub.s32 512, 512
      %88 = vsyncadd [#allocation10], %s87
      %s89 = sshll.u32 [#allocation11], 4
      %s90 = int_to_ptr.vmem [resolvable:$true] %s89
      %95 = dma.hbm_to_vmem [thread:$0]  %s11, 512, %s90, [#allocation10], 64, 64, 4
    $region49: #{tpu_custom_call.1} parent=1 // pred_fallthru
      _
    // Predicated region
    $region50: #{tpu_custom_call.1} parent=1 // pred_check
      _
    $region51: #{tpu_custom_call.1} parent=1 // pred_check_branch
      %97 = sbr.rel (0) target = $region53
    $region52: #{tpu_custom_call.1} parent=1 // pred_region
      _
    $region53: #{tpu_custom_call.1} parent=1 // pred_fallthru
      _
    // Predicated region
    $region54: #{tpu_custom_call.1} parent=1 // pred_check
      _
    $region55: #{tpu_custom_call.1} parent=1 // pred_check_branch
      %99 = sbr.rel (0) target = $region57
    $region56: #{tpu_custom_call.1} parent=1 // pred_region
      %100 = dma.done [#allocation4], 128
    $region57: #{tpu_custom_call.1} parent=1 // pred_fallthru
      _
    // Predicated region
    $region58: #{tpu_custom_call.1} parent=1 // pred_check
      _
    $region59: #{tpu_custom_call.1} parent=1 // pred_check_branch
      %102 = sbr.rel (0) target = $region61
    $region60: #{tpu_custom_call.1} parent=1 // pred_region
      %103 = dma.done [#allocation7], 512
    $region61: #{tpu_custom_call.1} parent=1 // pred_fallthru
      _
    // Predicated region
    $region62: #{tpu_custom_call.1} parent=1 // pred_check
      _
    $region63: #{tpu_custom_call.1} parent=1 // pred_check_branch
      %105 = sbr.rel (0) target = $region65
    $region64: #{tpu_custom_call.1} parent=1 // pred_region
      %106 = dma.done [#allocation7], 512
    $region65: #{tpu_custom_call.1} parent=1 // pred_fallthru
      _
    // Predicated region
    $region66: #{tpu_custom_call.1} parent=1 // pred_check
      _
    $region67: #{tpu_custom_call.1} parent=1 // pred_check_branch
      %108 = sbr.rel (0) target = $region69
    $region68: #{tpu_custom_call.1} parent=1 // pred_region
      %109 = dma.done [#allocation10], 512
    $region69: #{tpu_custom_call.1} parent=1 // pred_fallthru
      _
    // Predicated region
    $region70: #{tpu_custom_call.1} parent=1 // pred_check
      _
    $region71: #{tpu_custom_call.1} parent=1 // pred_check_branch
      %111 = sbr.rel (0) target = $region73
    $region72: #{tpu_custom_call.1} parent=1 // pred_region
      %112 = dma.done [#allocation10], 512
    $region73: #{tpu_custom_call.1} parent=1 // pred_fallthru
      _
    %p114 = scmp.eq.s32.totalorder 0, 0
    // Predicated region
    $region74: #{tpu_custom_call.1} parent=1 // pred_check
      %p115 = pneg %p114
    $region75: #{tpu_custom_call.1} parent=1 // pred_check_branch
      %117 = sbr.rel (%p115) target = $region77
    $region76: #{tpu_custom_call.1} parent=1 // pred_region
      %vm118 = vcmask 523264
      %119 = vst.msk [vmem:[#allocation2] sm:$0xff] %vm118, 0.0
    $region77: #{tpu_custom_call.1} parent=1 // pred_fallthru
      _
    %v120 = vld [vmem:[#allocation3] sm:$0xf]
    %v121 = vld [vmem:[#allocation3 + $0x4] sm:$0xf]
    %v122 = vld [vmem:[#allocation6] sm:$0xf]
    %v123 = vld [vmem:[#allocation6 + $0x4] sm:$0xf]
    %v124 = vld [vmem:[#allocation6 + $0x8] sm:$0xf]
    %v125 = vld [vmem:[#allocation6 + $0xc] sm:$0xf]
    %v126 = vld [vmem:[#allocation6 + $0x10] sm:$0xf]
    %v127 = vld [vmem:[#allocation6 + $0x14] sm:$0xf]
    %v128 = vld [vmem:[#allocation6 + $0x18] sm:$0xf]
    %v129 = vld [vmem:[#allocation6 + $0x1c] sm:$0xf]
    %v130 = vld [vmem:[%s5] sm:$0x1]
    %v132 = vlaneseq
    %v133 = vshrl.u32 %v132, 7
    %v134 = vsub.s32 0, %v133
    %v135 = vrot.slane %v130, %v134
    %v139 = vunpack.c.l.b16 %v120
    %v140 = vunpack.c.l.b16 %v121
    %v141 = vpack.c.b16 %v140, %v139
    %v150 = vunpack.c.l.b16 %v122
    %v151 = vunpack.c.l.b16 %v123
    %v152 = vunpack.c.l.b16 %v124
    %v153 = vunpack.c.l.b16 %v125
    %v154 = vunpack.c.l.b16 %v126
    %v155 = vunpack.c.l.b16 %v127
    %v156 = vunpack.c.l.b16 %v128
    %v157 = vunpack.c.l.b16 %v129
    %v158 = vpack.c.b16 %v151, %v150
    %v159 = vpack.c.b16 %v153, %v152
    %v160 = vpack.c.b16 %v155, %v154
    %v161 = vpack.c.b16 %v157, %v156
    %vm166 = vcmask 523264
    %v168 = vsel %vm166, %v141, 0
    %170 = vmatprep.subr.bf16.mxu0 0
    %171 = vmatpush1.bf16.msra.mxu0 0
    %172 = vmatprep.subr.bf16.mxu0 0
    %173 = vmatpush1.bf16.msra.mxu0 0
    %174 = vmatprep.subr.bf16.mxu0 0
    %175 = vmatpush1.bf16.msra.mxu0 0
    %176 = vmatprep.subr.bf16.mxu0 0
    %177 = vmatpush1.bf16.msra.mxu0 0
    %178 = vmatprep.subr.bf16.mxu0 0
    %179 = vmatpush1.bf16.msra.mxu0 %v161
    %180 = vmatprep.subr.bf16.mxu0 0
    %181 = vmatpush1.bf16.msra.mxu0 %v160
    %182 = vmatprep.subr.bf16.mxu0 0
    %183 = vmatpush1.bf16.msra.mxu0 %v159
    %184 = vmatprep.subr.bf16.mxu0 0
    %185 = vmatpush1.bf16.msra.mxu0 %v158
    %186 = vmatprep.subr.bf16.mxu0 0
    %187 = vmatpush2.bf16.msra.mxu0 0
    %188 = vmatprep.subr.bf16.mxu0 0
    %189 = vmatpush2.bf16.msra.mxu0 0
    %190 = vmatprep.subr.bf16.mxu0 0
    %191 = vmatpush2.bf16.msra.mxu0 0
    %192 = vmatprep.subr.bf16.mxu0 0
    %193 = vmatpush2.bf16.msra.mxu0 0
    %194 = vmatprep.subr.bf16.mxu0 0
    %195 = vmatpush2.bf16.msra.mxu0 0
    %196 = vmatprep.subr.bf16.mxu0 0
    %197 = vmatpush2.bf16.msra.mxu0 0
    %198 = vmatprep.subr.bf16.mxu0 0
    %199 = vmatpush2.bf16.msra.mxu0 0
    %200 = vmatprep.subr.bf16.mxu0 0
    %201 = vmatpush2.bf16.msra.mxu0 0
    %202 = vmatprep.mubr.bf16.mxu0 0
    %203 = vmatmul.mubr.bf16.gmra.mxu0 %v168
    %v204 = vpop.f32.mrf.mxu0
    %v205 = vadd.f32 %v135, %v204
    %v206 = vpop.f32.mrf.mxu0
    %v207 = vpop.f32.mrf.mxu0
    %v208 = vadd.f32 %v135, %v207
    %v209 = vpop.f32.mrf.mxu0
    %210 = vdwg.mxu0
    %v211 = vmax.f32 %v205, 0.0
    %v212 = vmax.f32 %v208, 0.0
    %v213 = vpack.c.bf16 %v212, %v211
    %v214 = vld [vmem:[#allocation8] sm:$0xf]
    %v215 = vld [vmem:[#allocation8 + $0x4] sm:$0xf]
    %v216 = vld [vmem:[#allocation8 + $0x8] sm:$0xf]
    %v217 = vld [vmem:[#allocation8 + $0xc] sm:$0xf]
    %v218 = vld [vmem:[#allocation8 + $0x10] sm:$0xf]
    %v219 = vld [vmem:[#allocation8 + $0x14] sm:$0xf]
    %v220 = vld [vmem:[#allocation8 + $0x18] sm:$0xf]
    %v221 = vld [vmem:[#allocation8 + $0x1c] sm:$0xf]
    %v222 = vld [vmem:[%s7] sm:$0x1]
    %v224 = vlaneseq
    %v225 = vshrl.u32 %v224, 7
    %v226 = vsub.s32 0, %v225
    %v227 = vrot.slane %v222, %v226
    %v237 = vunpack.c.l.b16 %v214
    %v238 = vunpack.c.l.b16 %v215
    %v239 = vunpack.c.l.b16 %v216
    %v240 = vunpack.c.l.b16 %v217
    %v241 = vunpack.c.l.b16 %v218
    %v242 = vunpack.c.l.b16 %v219
    %v243 = vunpack.c.l.b16 %v220
    %v244 = vunpack.c.l.b16 %v221
    %v245 = vpack.c.b16 %v238, %v237
    %v246 = vpack.c.b16 %v240, %v239
    %v247 = vpack.c.b16 %v242, %v241
    %v248 = vpack.c.b16 %v244, %v243
    %v254 = vsel %vm166, %v213, 0
    %256 = vmatprep.subr.bf16.mxu0 0
    %257 = vmatpush1.bf16.msra.mxu0 0
    %258 = vmatprep.subr.bf16.mxu0 0
    %259 = vmatpush1.bf16.msra.mxu0 0
    %260 = vmatprep.subr.bf16.mxu0 0
    %261 = vmatpush1.bf16.msra.mxu0 0
    %262 = vmatprep.subr.bf16.mxu0 0
    %263 = vmatpush1.bf16.msra.mxu0 0
    %264 = vmatprep.subr.bf16.mxu0 0
    %265 = vmatpush1.bf16.msra.mxu0 %v248
    %266 = vmatprep.subr.bf16.mxu0 0
    %267 = vmatpush1.bf16.msra.mxu0 %v247
    %268 = vmatprep.subr.bf16.mxu0 0
    %269 = vmatpush1.bf16.msra.mxu0 %v246
    %270 = vmatprep.subr.bf16.mxu0 0
    %271 = vmatpush1.bf16.msra.mxu0 %v245
    %272 = vmatprep.subr.bf16.mxu0 0
    %273 = vmatpush2.bf16.msra.mxu0 0
    %274 = vmatprep.subr.bf16.mxu0 0
    %275 = vmatpush2.bf16.msra.mxu0 0
    %276 = vmatprep.subr.bf16.mxu0 0
    %277 = vmatpush2.bf16.msra.mxu0 0
    %278 = vmatprep.subr.bf16.mxu0 0
    %279 = vmatpush2.bf16.msra.mxu0 0
    %280 = vmatprep.subr.bf16.mxu0 0
    %281 = vmatpush2.bf16.msra.mxu0 0
    %282 = vmatprep.subr.bf16.mxu0 0
    %283 = vmatpush2.bf16.msra.mxu0 0
    %284 = vmatprep.subr.bf16.mxu0 0
    %285 = vmatpush2.bf16.msra.mxu0 0
    %286 = vmatprep.subr.bf16.mxu0 0
    %287 = vmatpush2.bf16.msra.mxu0 0
    %288 = vmatprep.mubr.bf16.mxu0 0
    %289 = vmatmul.mubr.bf16.gmra.mxu0 %v254
    %v290 = vpop.f32.mrf.mxu0
    %v291 = vadd.f32 %v227, %v290
    %v292 = vpop.f32.mrf.mxu0
    %v293 = vpop.f32.mrf.mxu0
    %v294 = vadd.f32 %v227, %v293
    %v295 = vpop.f32.mrf.mxu0
    %296 = vdwg.mxu0
    %s297 = smul.u32 0, 8
    %v298 = vlaneseq
    %v299 = vshrl.u32 %v298, 7
    %v300 = vstv %s297
    %v301 = vadd.s32 %v300, %v299
    %v302 = vld [vmem:[%s0] sm:$0x1]
    %v303 = vlaneseq
    %v304 = vshrl.u32 %v303, 7
    %v305 = vsub.s32 0, %v304
    %v306 = vrot.slane %v302, %v305
    %vm307 = vcmp.eq.s32.totalorder %v301, %v306
    %v308 = vsel %vm307, 1, 0
    %v309 = vcvt.s32.f32 %v308
    %v310 = vpack.c.bf16 %v309, %v309
    %v311 = vld [vmem:[#allocation2] sm:$0xff]
    %v312 = vpack.c.bf16 %v294, %v291
    %vm313 = vcmask 130048
    %v315 = vsel %vm313, %v310, 0
    %317 = vmatprep.subr.bf16.mxu0 0
    %318 = vmatpush1.bf16.msra.mxu0 0
    %319 = vmatprep.subr.bf16.mxu0 0
    %320 = vmatpush1.bf16.msra.mxu0 0
    %321 = vmatprep.subr.bf16.mxu0 0
    %322 = vmatpush1.bf16.msra.mxu0 0
    %323 = vmatprep.subr.bf16.mxu0 0
    %324 = vmatpush1.bf16.msra.mxu0 0
    %325 = vmatprep.subr.bf16.mxu0 0
    %326 = vmatpush1.bf16.msra.mxu0 0
    %327 = vmatprep.subr.bf16.mxu0 0
    %328 = vmatpush1.bf16.msra.mxu0 0
    %329 = vmatprep.subr.bf16.mxu0 0
    %330 = vmatpush1.bf16.msra.mxu0 0
    %331 = vmatprep.subr.bf16.mxu0 0
    %332 = vmatpush1.bf16.msra.mxu0 %v312
    %333 = vmatprep.subr.bf16.mxu0 0
    %334 = vmatpush2.bf16.msra.mxu0 0
    %335 = vmatprep.subr.bf16.mxu0 0
    %336 = vmatpush2.bf16.msra.mxu0 0
    %337 = vmatprep.subr.bf16.mxu0 0
    %338 = vmatpush2.bf16.msra.mxu0 0
    %339 = vmatprep.subr.bf16.mxu0 0
    %340 = vmatpush2.bf16.msra.mxu0 0
    %341 = vmatprep.subr.bf16.mxu0 0
    %342 = vmatpush2.bf16.msra.mxu0 0
    %343 = vmatprep.subr.bf16.mxu0 0
    %344 = vmatpush2.bf16.msra.mxu0 0
    %345 = vmatprep.subr.bf16.mxu0 0
    %346 = vmatpush2.bf16.msra.mxu0 0
    %347 = vmatprep.subr.bf16.mxu0 0
    %348 = vmatpush2.bf16.msra.mxu0 0
    %349 = vmatprep.mubr.bf16.mxu0 0
    %350 = vmatmul.mubr.bf16.gmra.mxu0 %v315
    %v351 = vpop.f32.mrf.mxu0
    %v352 = vadd.f32 0.0, %v351
    %v353 = vpop.f32.mrf.mxu0
    %v354 = vpop.f32.mrf.mxu0
    %v355 = vpop.f32.mrf.mxu0
    %356 = vdwg.mxu0
    %v357 = vadd.f32 %v311, %v352
    %358 = vst.msk [vmem:[#allocation2] sm:$0xff] %vm166, %v357
    // Predicated region
    $region78: #{tpu_custom_call.1} parent=1 // pred_check
      %p359 = pneg %p114
    $region79: #{tpu_custom_call.1} parent=1 // pred_check_branch
      %361 = sbr.rel (%p359) target = $region81
    $region80: #{tpu_custom_call.1} parent=1 // pred_region
      %v362 = vld [vmem:[#allocation2] sm:$0xff]
      %v363 = vld [vmem:[%s3] sm:$0xff]
      %365 = vset.pattern.permute.xlu0 0
      %366 = vperm.xlu0 %365, %v363
      %v367 = vpop.permute.xlu0 %366
      %v369 = vmul.f32 %v362, %v367
      %v370 = vld [vmem:[%s2] sm:$0xf]
      %v371 = vld [vmem:[%s8] sm:$0xf]
      %v372 = vld [vmem:[%s8 + $0x4] sm:$0xf]
      %v373 = vld [vmem:[%s8 + $0x8] sm:$0xf]
      %v374 = vld [vmem:[%s8 + $0xc] sm:$0xf]
      %v375 = vpack.c.bf16 %v369, %v369
      %v376 = vld [vmem:[#allocation9] sm:$0xf]
      %v377 = vld [vmem:[#allocation9 + $0x4] sm:$0xf]
      %v378 = vld [vmem:[#allocation9 + $0x8] sm:$0xf]
      %v379 = vld [vmem:[#allocation9 + $0xc] sm:$0xf]
      %v380 = vld [vmem:[#allocation9 + $0x10] sm:$0xf]
      %v381 = vld [vmem:[#allocation9 + $0x14] sm:$0xf]
      %v382 = vld [vmem:[#allocation9 + $0x18] sm:$0xf]
      %v383 = vld [vmem:[#allocation9 + $0x1c] sm:$0xf]
      %v392 = vunpack.c.l.b16 %v376
      %v393 = vunpack.c.l.b16 %v377
      %v394 = vunpack.c.l.b16 %v378
      %v395 = vunpack.c.l.b16 %v379
      %v396 = vunpack.c.l.b16 %v380
      %v397 = vunpack.c.l.b16 %v381
      %v398 = vunpack.c.l.b16 %v382
      %v399 = vunpack.c.l.b16 %v383
      %v400 = vpack.c.b16 %v393, %v392
      %v401 = vpack.c.b16 %v395, %v394
      %v402 = vpack.c.b16 %v397, %v396
      %v403 = vpack.c.b16 %v399, %v398
      %v409 = vsel %vm166, %v375, 0
      %411 = vmatprep.subr.bf16.mxu0 0
      %412 = vmatpush1.bf16.msra.mxu0 0
      %413 = vmatprep.subr.bf16.mxu0 0
      %414 = vmatpush1.bf16.msra.mxu0 0
      %415 = vmatprep.subr.bf16.mxu0 0
      %416 = vmatpush1.bf16.msra.mxu0 0
      %417 = vmatprep.subr.bf16.mxu0 0
      %418 = vmatpush1.bf16.msra.mxu0 0
      %419 = vmatprep.subr.bf16.mxu0 0
      %420 = vmatpush1.bf16.msra.mxu0 %v403
      %421 = vmatprep.subr.bf16.mxu0 0
      %422 = vmatpush1.bf16.msra.mxu0 %v402
      %423 = vmatprep.subr.bf16.mxu0 0
      %424 = vmatpush1.bf16.msra.mxu0 %v401
      %425 = vmatprep.subr.bf16.mxu0 0
      %426 = vmatpush1.bf16.msra.mxu0 %v400
      %427 = vmatprep.subr.bf16.mxu0 0
      %428 = vmatpush2.bf16.msra.mxu0 0
      %429 = vmatprep.subr.bf16.mxu0 0
      %430 = vmatpush2.bf16.msra.mxu0 0
      %431 = vmatprep.subr.bf16.mxu0 0
      %432 = vmatpush2.bf16.msra.mxu0 0
      %433 = vmatprep.subr.bf16.mxu0 0
      %434 = vmatpush2.bf16.msra.mxu0 0
      %435 = vmatprep.subr.bf16.mxu0 0
      %436 = vmatpush2.bf16.msra.mxu0 0
      %437 = vmatprep.subr.bf16.mxu0 0
      %438 = vmatpush2.bf16.msra.mxu0 0
      %439 = vmatprep.subr.bf16.mxu0 0
      %440 = vmatpush2.bf16.msra.mxu0 0
      %441 = vmatprep.subr.bf16.mxu0 0
      %442 = vmatpush2.bf16.msra.mxu0 0
      %443 = vmatprep.mubr.bf16.mxu0 0
      %444 = vmatmul.mubr.bf16.gmra.mxu0 %v409
      %v445 = vpop.f32.mrf.mxu0
      %v446 = vadd.f32 0.0, %v445
      %v447 = vpop.f32.mrf.mxu0
      %v448 = vpop.f32.mrf.mxu0
      %v449 = vpop.f32.mrf.mxu0
      %450 = vdwg.mxu0
      %v455 = vunpack.c.l.b16 %v371
      %v456 = vunpack.c.l.b16 %v372
      %v457 = vunpack.c.l.b16 %v373
      %v458 = vunpack.c.l.b16 %v374
      %v459 = vpack.c.b16 %v456, %v455
      %v460 = vpack.c.b16 %v458, %v457
      %vm463 = vcmask 261120
      %v465 = vsel %vm463, %v370, 0
      %467 = vmatprep.subr.bf16.mxu0 0
      %468 = vmatpush1.bf16.msra.mxu0 0
      %469 = vmatprep.subr.bf16.mxu0 0
      %470 = vmatpush1.bf16.msra.mxu0 0
      %471 = vmatprep.subr.bf16.mxu0 0
      %472 = vmatpush1.bf16.msra.mxu0 0
      %473 = vmatprep.subr.bf16.mxu0 0
      %474 = vmatpush1.bf16.msra.mxu0 0
      %475 = vmatprep.subr.bf16.mxu0 0
      %476 = vmatpush1.bf16.msra.mxu0 0
      %477 = vmatprep.subr.bf16.mxu0 0
      %478 = vmatpush1.bf16.msra.mxu0 0
      %479 = vmatprep.subr.bf16.mxu0 0
      %480 = vmatpush1.bf16.msra.mxu0 %v460
      %481 = vmatprep.subr.bf16.mxu0 0
      %482 = vmatpush1.bf16.msra.mxu0 %v459
      %483 = vmatprep.subr.bf16.mxu0 0
      %484 = vmatpush2.bf16.msra.mxu0 0
      %485 = vmatprep.subr.bf16.mxu0 0
      %486 = vmatpush2.bf16.msra.mxu0 0
      %487 = vmatprep.subr.bf16.mxu0 0
      %488 = vmatpush2.bf16.msra.mxu0 0
      %489 = vmatprep.subr.bf16.mxu0 0
      %490 = vmatpush2.bf16.msra.mxu0 0
      %491 = vmatprep.subr.bf16.mxu0 0
      %492 = vmatpush2.bf16.msra.mxu0 0
      %493 = vmatprep.subr.bf16.mxu0 0
      %494 = vmatpush2.bf16.msra.mxu0 0
      %495 = vmatprep.subr.bf16.mxu0 0
      %496 = vmatpush2.bf16.msra.mxu0 0
      %497 = vmatprep.subr.bf16.mxu0 0
      %498 = vmatpush2.bf16.msra.mxu0 0
      %499 = vmatprep.mubr.bf16.mxu0 0
      %500 = vmatmul.mubr.bf16.gmra.mxu0 %v465
      %v501 = vpop.f32.mrf.mxu0
      %v502 = vadd.f32 %v446, %v501
      %v503 = vpop.f32.mrf.mxu0
      %v504 = vpop.f32.mrf.mxu0
      %v505 = vpop.f32.mrf.mxu0
      %506 = vdwg.mxu0
      %v507 = vld [vmem:[%s10] sm:$0x1]
      %v509 = vlaneseq
      %v510 = vshrl.u32 %v509, 7
      %v511 = vsub.s32 0, %v510
      %v512 = vrot.slane %v507, %v511
      %v514 = vadd.f32 %v502, %v512
      %v515 = vmax.f32 %v514, 0.0
      %v516 = vpack.c.bf16 %v515, %v515
      %v517 = vld [vmem:[#allocation11] sm:$0xf]
      %v518 = vld [vmem:[#allocation11 + $0x4] sm:$0xf]
      %v519 = vld [vmem:[#allocation11 + $0x8] sm:$0xf]
      %v520 = vld [vmem:[#allocation11 + $0xc] sm:$0xf]
      %v521 = vld [vmem:[#allocation11 + $0x10] sm:$0xf]
      %v522 = vld [vmem:[#allocation11 + $0x14] sm:$0xf]
      %v523 = vld [vmem:[#allocation11 + $0x18] sm:$0xf]
      %v524 = vld [vmem:[#allocation11 + $0x1c] sm:$0xf]
      %v525 = vld [vmem:[%s12] sm:$0x1]
      %v527 = vlaneseq
      %v528 = vshrl.u32 %v527, 7
      %v529 = vsub.s32 0, %v528
      %v530 = vrot.slane %v525, %v529
      %v540 = vunpack.c.l.b16 %v517
      %v541 = vunpack.c.l.b16 %v518
      %v542 = vunpack.c.l.b16 %v519
      %v543 = vunpack.c.l.b16 %v520
      %v544 = vunpack.c.l.b16 %v521
      %v545 = vunpack.c.l.b16 %v522
      %v546 = vunpack.c.l.b16 %v523
      %v547 = vunpack.c.l.b16 %v524
      %v548 = vpack.c.b16 %v541, %v540
      %v549 = vpack.c.b16 %v543, %v542
      %v550 = vpack.c.b16 %v545, %v544
      %v551 = vpack.c.b16 %v547, %v546
      %v557 = vsel %vm166, %v516, 0
      %559 = vmatprep.subr.bf16.mxu0 0
      %560 = vmatpush1.bf16.msra.mxu0 0
      %561 = vmatprep.subr.bf16.mxu0 0
      %562 = vmatpush1.bf16.msra.mxu0 0
      %563 = vmatprep.subr.bf16.mxu0 0
      %564 = vmatpush1.bf16.msra.mxu0 0
      %565 = vmatprep.subr.bf16.mxu0 0
      %566 = vmatpush1.bf16.msra.mxu0 0
      %567 = vmatprep.subr.bf16.mxu0 0
      %568 = vmatpush1.bf16.msra.mxu0 %v551
      %569 = vmatprep.subr.bf16.mxu0 0
      %570 = vmatpush1.bf16.msra.mxu0 %v550
      %571 = vmatprep.subr.bf16.mxu0 0
      %572 = vmatpush1.bf16.msra.mxu0 %v549
      %573 = vmatprep.subr.bf16.mxu0 0
      %574 = vmatpush1.bf16.msra.mxu0 %v548
      %575 = vmatprep.subr.bf16.mxu0 0
      %576 = vmatpush2.bf16.msra.mxu0 0
      %577 = vmatprep.subr.bf16.mxu0 0
      %578 = vmatpush2.bf16.msra.mxu0 0
      %579 = vmatprep.subr.bf16.mxu0 0
      %580 = vmatpush2.bf16.msra.mxu0 0
      %581 = vmatprep.subr.bf16.mxu0 0
      %582 = vmatpush2.bf16.msra.mxu0 0
      %583 = vmatprep.subr.bf16.mxu0 0
      %584 = vmatpush2.bf16.msra.mxu0 0
      %585 = vmatprep.subr.bf16.mxu0 0
      %586 = vmatpush2.bf16.msra.mxu0 0
      %587 = vmatprep.subr.bf16.mxu0 0
      %588 = vmatpush2.bf16.msra.mxu0 0
      %589 = vmatprep.subr.bf16.mxu0 0
      %590 = vmatpush2.bf16.msra.mxu0 0
      %591 = vmatprep.mubr.bf16.mxu0 0
      %592 = vmatmul.mubr.bf16.gmra.mxu0 %v557
      %v593 = vpop.f32.mrf.mxu0
      %v594 = vadd.f32 %v530, %v593
      %v595 = vpop.f32.mrf.mxu0
      %v596 = vpop.f32.mrf.mxu0
      %v597 = vpop.f32.mrf.mxu0
      %598 = vdwg.mxu0
      %599 = vst.msk [vmem:[#allocation12] sm:$0xff] %vm166, %v594
    $region81: #{tpu_custom_call.1} parent=1 // pred_fallthru
      _
    // Predicated region
    $region82: #{tpu_custom_call.1} parent=1 // pred_check
      _
    $region83: #{tpu_custom_call.1} parent=1 // pred_check_branch
      %601 = sbr.rel (0) target = $region85
    $region84: #{tpu_custom_call.1} parent=1 // pred_region
      %s603 = ssub.s32 128, 128
      %604 = vsyncadd [#allocation5], %s603
      %s606 = sshll.u32 [#allocation12], 4
      %s607 = int_to_ptr.vmem [resolvable:$true] %s606
      %609 = dma.vmem_to_hbm [thread:$0]  %s607, 128, %s13, [#allocation5]
    $region85: #{tpu_custom_call.1} parent=1 // pred_fallthru
      _
    // Predicated region
    $region86: #{tpu_custom_call.1} parent=1 // pred_check
      _
    $region87: #{tpu_custom_call.1} parent=1 // pred_check_branch
      %611 = sbr.rel (0) target = $region89
    $region88: #{tpu_custom_call.1} parent=1 // pred_region
      %612 = dma.done [#allocation5], 128
    $region89: #{tpu_custom_call.1} parent=1 // pred_fallthru
      _
    %613 = vsyncpa [#allocation4], 1
    %614 = vsyncpa [#allocation7], 1
    %615 = vsyncpa [#allocation10], 1
    %616 = vsyncpa [#allocation5], 1

</llo_original>
